<compile_context>
chip_gen: v7x
topology: tpu7x:2x2x1
jax: 0.10.0
libtpu: 0.0.40
codegen_flags: <defaults>
</compile_context>

<pallas_src>
import jax
import jax.numpy as jnp
from jax.experimental import pallas as pl
from jax.experimental.pallas import tpu as pltpu


def _ff_kernel(x_ref, w_ref, b_ref, o_ref, acc_ref):
    """One (tm, n_p) output tile, accumulated over the K grid axis."""
    k = pl.program_id(1)

    @pl.when(k == 0)
    def _():
        acc_ref[...] = jnp.zeros_like(acc_ref)

    acc_ref[...] += jnp.dot(
        x_ref[...], w_ref[...], preferred_element_type=jnp.float32
    )

    @pl.when(k == pl.num_programs(1) - 1)
    def _():
        y = acc_ref[...] + b_ref[...]  # lane-wise f32 bias broadcast
        # LeakyReLU: max(y, a*y) is only equivalent for slopes a in [0, 1]
        # (fine for a = 0.2) -- revisit if the slope ever changes.
        o_ref[...] = jnp.maximum(y, 0.2 * y).astype(o_ref.dtype)


def _round_up(x, m):
    return ((x + m - 1) // m) * m


def _cdiv(a, b):
    return -(-a // b)


def _choose_tm(batch, tm_max):
    """Batch-tile rows: multiple of 16 (bf16 sublane packing); >=2 tiles for
    large batches so both v7x TensorCores get work."""
    if batch <= 256:
        return batch  # one exact tile; block == full array dim is always legal
    tiles = max(2, _cdiv(batch, tm_max))
    return min(tm_max, _round_up(_cdiv(batch, tiles), 16))


def _choose_tk(in_dim, k_max=512):
    """K tile: full in_dim if small enough, else a 128-multiple dividing it."""
    if in_dim <= k_max:
        return in_dim
    tk = k_max
    while tk >= 128:
        if in_dim % tk == 0:
            return tk
        tk -= 128
    # TODO(synk): mask the ragged K tail instead of falling back to full-K residency.
    return in_dim


def prepare_ff_params(w_t, b, compute_dtype=jnp.bfloat16):
    """One-time (per parameter update) padding + cast, outside the forward path.

    w_t: [in_dim, out_dim] (transpose of PyTorch's [out_dim, in_dim]); b: [out_dim].
    Pads out_dim to a multiple of 128 for lane-dense stores and casts the
    weight to the MXU compute dtype.  The bias stays f32 (added post-matmul).
    """
    in_dim, out_dim = w_t.shape
    n_p = _round_up(out_dim, 128)
    if n_p != out_dim:
        w_t = jnp.pad(w_t, ((0, 0), (0, n_p - out_dim)))
        b = jnp.pad(b, (0, n_p - out_dim))
    w_c = w_t.astype(compute_dtype)
    b2 = b.reshape(1, n_p).astype(jnp.float32)
    return w_c, b2, out_dim


def ff_forward(x, params, *, tm_max=512, k_max=512):
    """LeakyReLU(x @ W + b, negative_slope=0.2) via a Pallas TPU kernel.

    x: [B, in_dim] (output keeps x.dtype); params: output of prepare_ff_params.
    """
    w_c, b2, out_dim = params
    B, in_dim = x.shape
    k_dim, n_p = w_c.shape
    assert k_dim == in_dim, "weight in_dim mismatch"
    out_dtype = x.dtype
    compute_dtype = w_c.dtype
    x_c = x.astype(compute_dtype)

    tm = _choose_tm(B, tm_max)
    tk = _choose_tk(in_dim, k_max)
    m_tiles = _cdiv(B, tm)
    k_tiles = in_dim // tk

    # Explicit VMEM budget: double-buffered x / w / out tiles + f32 accumulator.
    c_sz = jnp.dtype(compute_dtype).itemsize
    o_sz = jnp.dtype(out_dtype).itemsize
    need = (2 * tm * tk * c_sz + 2 * tk * n_p * c_sz + 2 * n_p * 4
            + 2 * tm * n_p * o_sz + tm * n_p * 4)
    vmem_limit = int(min(64 << 20, max(32 << 20, 2 * need)))

    cost = pl.CostEstimate(
        flops=2 * B * in_dim * n_p,
        transcendentals=0,
        bytes_accessed=(B * in_dim * c_sz + in_dim * n_p * c_sz
                        + n_p * 4 + B * n_p * o_sz),
    )

    def _run(single_buffer_consts):
        # Constant blocks (index_map independent of the grid) only need one
        # VMEM buffer: bias always, weight only when there is a single K tile
        # (with K tiling the weight block changes each step -> keep 2 buffers).
        if single_buffer_consts:
            w_kw = {"pipeline_mode": pl.Buffered(1)} if k_tiles == 1 else {}
            b_kw = {"pipeline_mode": pl.Buffered(1)}
        else:
            w_kw, b_kw = {}, {}
        grid_spec = pltpu.PrefetchScalarGridSpec(
            num_scalar_prefetch=0,
            grid=(m_tiles, k_tiles),
            in_specs=[
                pl.BlockSpec((tm, tk), lambda i, k: (i, k)),
                pl.BlockSpec((tk, n_p), lambda i, k: (k, 0), **w_kw),
                pl.BlockSpec((1, n_p), lambda i, k: (0, 0), **b_kw),
            ],
            out_specs=pl.BlockSpec((tm, n_p), lambda i, k: (i, 0)),
            scratch_shapes=[pltpu.VMEM((tm, n_p), jnp.float32)],
        )
        return pl.pallas_call(
            _ff_kernel,
            out_shape=jax.ShapeDtypeStruct((B, n_p), out_dtype),
            grid_spec=grid_spec,
            compiler_params=pltpu.CompilerParams(
                dimension_semantics=("parallel", "arbitrary"),
                vmem_limit_bytes=vmem_limit,
            ),
            cost_estimate=cost,
        )(x_c, w_c, b2)

    try:
        out_p = _run(single_buffer_consts=True)
    except Exception:
        # jax versions without BlockSpec(pipeline_mode=...): identical result,
        # constants just stay double-buffered (slightly more VMEM).
        out_p = _run(single_buffer_consts=False)

    # Skip the lane-unpad slice when out_dim is already 128-aligned (downstream
    # fused ops could also consume the lane-padded buffer directly).
    return out_p if n_p == out_dim else out_p[:, :out_dim]


def ff_reference(x, w_t, b):
    y = x @ w_t + b[None, :]
    return jnp.where(y >= 0.0, y, 0.2 * y)


if __name__ == "__main__":
    key = jax.random.PRNGKey(0)
    kx, kw, kb = jax.random.split(key, 3)

    batch, in_dim, out_dim = 8, 32, 64

    # Deterministic param init (PyTorch Linear-style uniform bound); the weight
    # is stored as [in_dim, out_dim] (transpose of PyTorch's [out_dim, in_dim]).
    bound = 1.0 / float(in_dim) ** 0.5
    w_t = jax.random.uniform(kw, (in_dim, out_dim), jnp.float32, -bound, bound)
    b = jax.random.uniform(kb, (out_dim,), jnp.float32, -bound, bound)
    x = jax.random.normal(kx, (batch, in_dim), jnp.float32)

    ref = ff_reference(x, w_t, b)

    # f32 compute path: bit-for-bit comparable to the reference.
    params_f32 = prepare_ff_params(w_t, b, compute_dtype=jnp.float32)
    out_f32 = jax.block_until_ready(ff_forward(x, params_f32))
    assert out_f32.shape == (batch, out_dim)
    assert out_f32.dtype == x.dtype
    assert jnp.allclose(out_f32, ref, atol=1e-5, rtol=1e-5)

    # bf16 compute path (default, per perf review): looser tolerance.
    params_bf16 = prepare_ff_params(w_t, b)  # bfloat16 weights/activations
    out_bf16 = jax.block_until_ready(ff_forward(x, params_bf16))
    assert out_bf16.shape == (batch, out_dim)
    assert jnp.allclose(out_bf16, ref, atol=3e-2, rtol=3e-2)

    print("KERNEL_OK")
</pallas_src>

<mosaic_0001>
module attributes {stable_mosaic.version = 11 : i64} {
  func.func @_ff_kernel(%arg0: i32, %arg1: i32, %arg2: memref<8x32xf32, #tpu.memory_space<vmem>>, %arg3: memref<32x128xf32, #tpu.memory_space<vmem>>, %arg4: memref<1x128xf32, #tpu.memory_space<vmem>>, %arg5: memref<8x128xf32, #tpu.memory_space<vmem>>, %arg6: memref<8x128xf32, #tpu.memory_space<vmem>>) attributes {dimension_semantics = [#tpu.dimension_semantics<parallel>, #tpu.dimension_semantics<arbitrary>], iteration_bounds = array<i64: 1, 1>, scalar_prefetch = 0 : i64, scratch_operands = 1 : i64, tpu.core_type = #tpu.core_type<tc>, window_params = [{transform_indices = @transform_0, window_bounds = array<i64: 8, 32>}, {pipeline_mode = #tpu.pipeline_mode<synchronous>, transform_indices = @transform_1, window_bounds = array<i64: 32, 128>}, {pipeline_mode = #tpu.pipeline_mode<synchronous>, transform_indices = @transform_2, window_bounds = array<i64: 1, 128>}, {transform_indices = @transform_3, window_bounds = array<i64: 8, 128>}]} {
    %c0_i32 = arith.constant 0 : i32
    %0 = arith.cmpi eq, %arg1, %c0_i32 : i32
    %1 = arith.extui %0 : i1 to i32
    %c0_i32_0 = arith.constant 0 : i32
    %2 = arith.cmpi ne, %1, %c0_i32_0 : i32
    scf.if %2 {
      %cst_10 = arith.constant 0.000000e+00 : f32
      %12 = vector.broadcast %cst_10 : f32 to vector<8x128xf32>
      %c0_11 = arith.constant 0 : index
      %c0_12 = arith.constant 0 : index
      %13 = vector.load %arg6[%c0_11, %c0_12] : memref<8x128xf32, #tpu.memory_space<vmem>>, vector<8x128xf32>
      tpu.vector_store %arg6[%c0_11, %c0_12], %12 {strides = array<i32>} : memref<8x128xf32, #tpu.memory_space<vmem>>, vector<8x128xf32>,
    } else {
    }
    %c0 = arith.constant 0 : index
    %c0_1 = arith.constant 0 : index
    %3 = vector.load %arg6[%c0, %c0_1] : memref<8x128xf32, #tpu.memory_space<vmem>>, vector<8x128xf32>
    %c0_2 = arith.constant 0 : index
    %c0_3 = arith.constant 0 : index
    %4 = vector.load %arg2[%c0_2, %c0_3] : memref<8x32xf32, #tpu.memory_space<vmem>>, vector<8x32xf32>
    %c0_4 = arith.constant 0 : index
    %c0_5 = arith.constant 0 : index
    %5 = vector.load %arg3[%c0_4, %c0_5] : memref<32x128xf32, #tpu.memory_space<vmem>>, vector<32x128xf32>
    %cst = arith.constant dense<0.000000e+00> : vector<8x128xf32>
    %6 = tpu.matmul %4, %5, %cst {dimension_numbers = #tpu.dot_dimension_numbers<[1], [0], [0], [1], [0, 0, 1, 1], [], []>} : vector<8x32xf32>, vector<32x128xf32>, vector<8x128xf32> -> vector<8x128xf32>
    %7 = arith.addf %3, %6 : vector<8x128xf32>
    %c0_6 = arith.constant 0 : index
    %c0_7 = arith.constant 0 : index
    %8 = vector.load %arg6[%c0_6, %c0_7] : memref<8x128xf32, #tpu.memory_space<vmem>>, vector<8x128xf32>
    tpu.vector_store %arg6[%c0_6, %c0_7], %7 {strides = array<i32>} : memref<8x128xf32, #tpu.memory_space<vmem>>, vector<8x128xf32>,
    %c0_i32_8 = arith.constant 0 : i32
    %9 = arith.cmpi eq, %arg1, %c0_i32_8 : i32
    %10 = arith.extui %9 : i1 to i32
    %c0_i32_9 = arith.constant 0 : i32
    %11 = arith.cmpi ne, %10, %c0_i32_9 : i32
    scf.if %11 {
      %c0_10 = arith.constant 0 : index
      %c0_11 = arith.constant 0 : index
      %12 = vector.load %arg6[%c0_10, %c0_11] : memref<8x128xf32, #tpu.memory_space<vmem>>, vector<8x128xf32>
      %c0_12 = arith.constant 0 : index
      %c0_13 = arith.constant 0 : index
      %13 = vector.load %arg4[%c0_12, %c0_13] : memref<1x128xf32, #tpu.memory_space<vmem>>, vector<1x128xf32>
      %14 = vector.broadcast %13 : vector<1x128xf32> to vector<8x128xf32>
      %15 = arith.addf %12, %14 : vector<8x128xf32>
      %cst_14 = arith.constant 2.000000e-01 : f32
      %16 = vector.broadcast %cst_14 : f32 to vector<8x128xf32>
      %17 = arith.mulf %16, %15 : vector<8x128xf32>
      %18 = arith.maximumf %15, %17 : vector<8x128xf32>
      %c0_15 = arith.constant 0 : index
      %c0_16 = arith.constant 0 : index
      %19 = vector.load %arg5[%c0_15, %c0_16] : memref<8x128xf32, #tpu.memory_space<vmem>>, vector<8x128xf32>
      tpu.vector_store %arg5[%c0_15, %c0_16], %18 {strides = array<i32>} : memref<8x128xf32, #tpu.memory_space<vmem>>, vector<8x128xf32>,
    } else {
    }
    return
  }
  func.func @transform_0(%arg0: i32, %arg1: i32) -> (i32, i32) {
    %c0_i32 = arith.constant 0 : i32
    return %arg0, %arg1 : i32, i32
  }
  func.func @transform_1(%arg0: i32, %arg1: i32) -> (i32, i32) {
    %c0_i32 = arith.constant 0 : i32
    %c0_i32_0 = arith.constant 0 : i32
    return %arg1, %c0_i32 : i32, i32
  }
  func.func @transform_2(%arg0: i32, %arg1: i32) -> (i32, i32) {
    %c0_i32 = arith.constant 0 : i32
    %c0_i32_0 = arith.constant 0 : i32
    %c0_i32_1 = arith.constant 0 : i32
    return %c0_i32, %c0_i32_0 : i32, i32
  }
  func.func @transform_3(%arg0: i32, %arg1: i32) -> (i32, i32) {
    %c0_i32 = arith.constant 0 : i32
    %c0_i32_0 = arith.constant 0 : i32
    return %arg0, %c0_i32 : i32, i32
  }
}

module attributes {stable_mosaic.version = 11 : i64} {
  func.func @_ff_kernel(%arg0: i32, %arg1: i32, %arg2: memref<8x32xf32, #tpu.memory_space<vmem>>, %arg3: memref<32x128xf32, #tpu.memory_space<vmem>>, %arg4: memref<1x128xf32, #tpu.memory_space<vmem>>, %arg5: memref<8x128xf32, #tpu.memory_space<vmem>>, %arg6: memref<8x128xf32, #tpu.memory_space<vmem>>) attributes {dimension_semantics = [#tpu.dimension_semantics<parallel>, #tpu.dimension_semantics<arbitrary>], iteration_bounds = array<i64: 1, 1>, scalar_prefetch = 0 : i64, scratch_operands = 1 : i64, tpu.core_type = #tpu.core_type<tc>, window_params = [{transform_indices = @transform_0, window_bounds = array<i64: 8, 32>}, {transform_indices = @transform_1, window_bounds = array<i64: 32, 128>}, {pipeline_mode = #tpu.pipeline_mode<synchronous>, transform_indices = @transform_2, window_bounds = array<i64: 1, 128>}, {transform_indices = @transform_3, window_bounds = array<i64: 8, 128>}]} {
    %c0_i32 = arith.constant 0 : i32
    %0 = arith.cmpi eq, %arg1, %c0_i32 : i32
    %1 = arith.extui %0 : i1 to i32
    %c0_i32_0 = arith.constant 0 : i32
    %2 = arith.cmpi ne, %1, %c0_i32_0 : i32
    scf.if %2 {
      %cst_10 = arith.constant 0.000000e+00 : f32
      %12 = vector.broadcast %cst_10 : f32 to vector<8x128xf32>
      %c0_11 = arith.constant 0 : index
      %c0_12 = arith.constant 0 : index
      %13 = vector.load %arg6[%c0_11, %c0_12] : memref<8x128xf32, #tpu.memory_space<vmem>>, vector<8x128xf32>
      tpu.vector_store %arg6[%c0_11, %c0_12], %12 {strides = array<i32>} : memref<8x128xf32, #tpu.memory_space<vmem>>, vector<8x128xf32>,
    } else {
    }
    %c0 = arith.constant 0 : index
    %c0_1 = arith.constant 0 : index
    %3 = vector.load %arg6[%c0, %c0_1] : memref<8x128xf32, #tpu.memory_space<vmem>>, vector<8x128xf32>
    %c0_2 = arith.constant 0 : index
    %c0_3 = arith.constant 0 : index
    %4 = vector.load %arg2[%c0_2, %c0_3] : memref<8x32xf32, #tpu.memory_space<vmem>>, vector<8x32xf32>
    %c0_4 = arith.constant 0 : index
    %c0_5 = arith.constant 0 : index
    %5 = vector.load %arg3[%c0_4, %c0_5] : memref<32x128xf32, #tpu.memory_space<vmem>>, vector<32x128xf32>
    %cst = arith.constant dense<0.000000e+00> : vector<8x128xf32>
    %6 = tpu.matmul %4, %5, %cst {dimension_numbers = #tpu.dot_dimension_numbers<[1], [0], [0], [1], [0, 0, 1, 1], [], []>} : vector<8x32xf32>, vector<32x128xf32>, vector<8x128xf32> -> vector<8x128xf32>
    %7 = arith.addf %3, %6 : vector<8x128xf32>
    %c0_6 = arith.constant 0 : index
    %c0_7 = arith.constant 0 : index
    %8 = vector.load %arg6[%c0_6, %c0_7] : memref<8x128xf32, #tpu.memory_space<vmem>>, vector<8x128xf32>
    tpu.vector_store %arg6[%c0_6, %c0_7], %7 {strides = array<i32>} : memref<8x128xf32, #tpu.memory_space<vmem>>, vector<8x128xf32>,
    %c0_i32_8 = arith.constant 0 : i32
    %9 = arith.cmpi eq, %arg1, %c0_i32_8 : i32
    %10 = arith.extui %9 : i1 to i32
    %c0_i32_9 = arith.constant 0 : i32
    %11 = arith.cmpi ne, %10, %c0_i32_9 : i32
    scf.if %11 {
      %c0_10 = arith.constant 0 : index
      %c0_11 = arith.constant 0 : index
      %12 = vector.load %arg6[%c0_10, %c0_11] : memref<8x128xf32, #tpu.memory_space<vmem>>, vector<8x128xf32>
      %c0_12 = arith.constant 0 : index
      %c0_13 = arith.constant 0 : index
      %13 = vector.load %arg4[%c0_12, %c0_13] : memref<1x128xf32, #tpu.memory_space<vmem>>, vector<1x128xf32>
      %14 = vector.broadcast %13 : vector<1x128xf32> to vector<8x128xf32>
      %15 = arith.addf %12, %14 : vector<8x128xf32>
      %cst_14 = arith.constant 2.000000e-01 : f32
      %16 = vector.broadcast %cst_14 : f32 to vector<8x128xf32>
      %17 = arith.mulf %16, %15 : vector<8x128xf32>
      %18 = arith.maximumf %15, %17 : vector<8x128xf32>
      %c0_15 = arith.constant 0 : index
      %c0_16 = arith.constant 0 : index
      %19 = vector.load %arg5[%c0_15, %c0_16] : memref<8x128xf32, #tpu.memory_space<vmem>>, vector<8x128xf32>
      tpu.vector_store %arg5[%c0_15, %c0_16], %18 {strides = array<i32>} : memref<8x128xf32, #tpu.memory_space<vmem>>, vector<8x128xf32>,
    } else {
    }
    return
  }
  func.func @transform_0(%arg0: i32, %arg1: i32) -> (i32, i32) {
    %c0_i32 = arith.constant 0 : i32
    return %arg0, %arg1 : i32, i32
  }
  func.func @transform_1(%arg0: i32, %arg1: i32) -> (i32, i32) {
    %c0_i32 = arith.constant 0 : i32
    %c0_i32_0 = arith.constant 0 : i32
    return %arg1, %c0_i32 : i32, i32
  }
  func.func @transform_2(%arg0: i32, %arg1: i32) -> (i32, i32) {
    %c0_i32 = arith.constant 0 : i32
    %c0_i32_0 = arith.constant 0 : i32
    %c0_i32_1 = arith.constant 0 : i32
    return %c0_i32, %c0_i32_0 : i32, i32
  }
  func.func @transform_3(%arg0: i32, %arg1: i32) -> (i32, i32) {
    %c0_i32 = arith.constant 0 : i32
    %c0_i32_0 = arith.constant 0 : i32
    return %arg0, %c0_i32 : i32, i32
  }
}

</mosaic_0001>

<llo_original>
// kernel: tpu_custom_call.1
$region0: #{tpu_custom_call.1}
  #allocation0 [shape = 'u32[]', space=smem, size = 0x4, offset = 0x4, fixed_abs, tag = 'smem constant byte address 0x4 - core index']
  #allocation1 [shape = 'u32[144,128]{1,0:T(1,128)}', space=vmem, size = 0x12000, scoped, tag = 'internal scratch']
  #allocation2 [shape = 'f32[8,128]{1,0:T(8,128)}', space=vmem, size = 0x1000, scoped, tag = 'scratch operand']
  %s0 = inlined_call_operand.hbm [shape: f32[8,32], index: 0, kind: input, shape index: {}]
  %s1 = inlined_call_operand.hbm [shape: f32[32,128], index: 1, kind: input, shape index: {}]
  %s2 = inlined_call_operand.vmem [shape: f32[1,128], index: 2, kind: input, shape index: {}]
  %s3 = inlined_call_operand.hbm [shape: f32[8,128], index: 3, kind: output, shape index: {}]
  %s4 = sld [smem:[#allocation0]]
  $region38: #{tpu_custom_call.1} parent=0
    _
  %s6 = ssub.s32 1, %s4
  %s7 = scalar_select 0, %s6, %s4
  $region1: #{tpu_custom_call.1} parent=0
    #allocation3 [shape = 'u8[4096]{0}', space=vmem, size = 0x1000, scoped, tag = 'input window, operand 0, single buffered']
    #allocation4 [shape = 's32[1]{0}', space=sflag, size = 0x4, scoped, tag = 'scoped memory for tpu_custom_call.1']
    #allocation5 [shape = 's32[1]{0}', space=sflag, size = 0x4, scoped, tag = 'scoped memory for tpu_custom_call.1']
    #allocation6 [shape = 'u8[16384]{0}', space=vmem, size = 0x4000, scoped, tag = 'input window, operand 1, single buffered']
    #allocation7 [shape = 's32[1]{0}', space=sflag, size = 0x4, scoped, tag = 'scoped memory for tpu_custom_call.1']
    #allocation8 [shape = 'u8[4096]{0}', space=vmem, size = 0x1000, scoped, tag = 'output window, operand 0, single buffered']
    %8 = vsyncpa [#allocation4], 0
    %9 = vsyncpa [#allocation7], 0
    %10 = vsyncpa [#allocation5], 0
    // Predicated region
    $region2: #{tpu_custom_call.1} parent=1 // pred_check
      _
    $region3: #{tpu_custom_call.1} parent=1 // pred_check_branch
      %12 = sbr.rel (0) target = $region5
    $region4: #{tpu_custom_call.1} parent=1 // pred_region
      %s14 = ssub.s32 128, 128
      %15 = vsyncadd [#allocation4], %s14
      %s17 = sshll.u32 [#allocation3], 4
      %s18 = int_to_ptr.vmem [resolvable:$true] %s17
      %20 = dma.hbm_to_vmem [thread:$0]  %s0, 128, %s18, [#allocation4]
    $region5: #{tpu_custom_call.1} parent=1 // pred_fallthru
      _
    // Predicated region
    $region6: #{tpu_custom_call.1} parent=1 // pred_check
      _
    $region7: #{tpu_custom_call.1} parent=1 // pred_check_branch
      %22 = sbr.rel (0) target = $region9
    $region8: #{tpu_custom_call.1} parent=1 // pred_region
      %s24 = ssub.s32 512, 512
      %25 = vsyncadd [#allocation7], %s24
      %s26 = sshll.u32 [#allocation6], 4
      %s27 = int_to_ptr.vmem [resolvable:$true] %s26
      %32 = dma.hbm_to_vmem [thread:$0]  %s1, 512, %s27, [#allocation7], 128, 128, 8
    $region9: #{tpu_custom_call.1} parent=1 // pred_fallthru
      _
    // Predicated region
    $region10: #{tpu_custom_call.1} parent=1 // pred_check
      _
    $region11: #{tpu_custom_call.1} parent=1 // pred_check_branch
      %34 = sbr.rel (0) target = $region13
    $region12: #{tpu_custom_call.1} parent=1 // pred_region
      _
    $region13: #{tpu_custom_call.1} parent=1 // pred_fallthru
      _
    // Predicated region
    $region14: #{tpu_custom_call.1} parent=1 // pred_check
      _
    $region15: #{tpu_custom_call.1} parent=1 // pred_check_branch
      %36 = sbr.rel (0) target = $region17
    $region16: #{tpu_custom_call.1} parent=1 // pred_region
      %37 = dma.done [#allocation4], 128
    $region17: #{tpu_custom_call.1} parent=1 // pred_fallthru
      _
    // Predicated region
    $region18: #{tpu_custom_call.1} parent=1 // pred_check
      _
    $region19: #{tpu_custom_call.1} parent=1 // pred_check_branch
      %39 = sbr.rel (0) target = $region21
    $region20: #{tpu_custom_call.1} parent=1 // pred_region
      %40 = dma.done [#allocation7], 512
    $region21: #{tpu_custom_call.1} parent=1 // pred_fallthru
      _
    %p41 = scmp.eq.s32.totalorder 0, 0
    // Predicated region
    $region22: #{tpu_custom_call.1} parent=1 // pred_check
      %p42 = pneg %p41
    $region23: #{tpu_custom_call.1} parent=1 // pred_check_branch
      %44 = sbr.rel (%p42) target = $region25
    $region24: #{tpu_custom_call.1} parent=1 // pred_region
      %45 = vst [vmem:[#allocation2] sm:$0xff] 0.0
    $region25: #{tpu_custom_call.1} parent=1 // pred_fallthru
      _
    %v46 = vld [vmem:[#allocation2] sm:$0xff]
    %v47 = vld [vmem:[#allocation3] sm:$0xff]
    %v48 = vld [vmem:[#allocation6] sm:$0xff]
    %v49 = vld [vmem:[#allocation6 + $0x8] sm:$0xff]
    %v50 = vld [vmem:[#allocation6 + $0x10] sm:$0xff]
    %v51 = vld [vmem:[#allocation6 + $0x18] sm:$0xff]
    %vm52 = vcmask 261120
    %v54 = vsel %vm52, %v47, 0
    %56 = vmatprep.subr.mxu0 0.0
    %57 = vmatpush1.msra.mxu0 %v48
    %58 = vmatprep.subr.mxu0 0.0
    %59 = vmatpush1.msra.mxu0 %v49
    %60 = vmatprep.subr.mxu0 0.0
    %61 = vmatpush1.msra.mxu0 %v50
    %62 = vmatprep.subr.mxu0 0.0
    %63 = vmatpush1.msra.mxu0 %v51
    %64 = vmatprep.subr.mxu0 0.0
    %65 = vmatpush1.msra.mxu0 0.0
    %66 = vmatprep.subr.mxu0 0.0
    %67 = vmatpush1.msra.mxu0 0.0
    %68 = vmatprep.subr.mxu0 0.0
    %69 = vmatpush1.msra.mxu0 0.0
    %70 = vmatprep.subr.mxu0 0.0
    %71 = vmatpush1.msra.mxu0 0.0
    %72 = vmatprep.subr.mxu0 0.0
    %73 = vmatpush1.msra.mxu0 0.0
    %74 = vmatprep.subr.mxu0 0.0
    %75 = vmatpush1.msra.mxu0 0.0
    %76 = vmatprep.subr.mxu0 0.0
    %77 = vmatpush1.msra.mxu0 0.0
    %78 = vmatprep.subr.mxu0 0.0
    %79 = vmatpush1.msra.mxu0 0.0
    %80 = vmatprep.subr.mxu0 0.0
    %81 = vmatpush1.msra.mxu0 0.0
    %82 = vmatprep.subr.mxu0 0.0
    %83 = vmatpush1.msra.mxu0 0.0
    %84 = vmatprep.subr.mxu0 0.0
    %85 = vmatpush1.msra.mxu0 0.0
    %86 = vmatprep.subr.mxu0 0.0
    %87 = vmatpush1.msra.mxu0 0.0
    %88 = vmatprep.subr.mxu0 0.0
    %89 = vmatpush1.msra.mxu0 0.0
    %90 = vmatprep.subr.mxu0 0.0
    %91 = vmatpush1.msra.mxu0 0.0
    %92 = vmatprep.subr.mxu0 0.0
    %93 = vmatpush1.msra.mxu0 0.0
    %94 = vmatprep.subr.mxu0 0.0
    %95 = vmatpush1.msra.mxu0 0.0
    %96 = vmatprep.subr.mxu0 0.0
    %97 = vmatpush1.msra.mxu0 0.0
    %98 = vmatprep.subr.mxu0 0.0
    %99 = vmatpush1.msra.mxu0 0.0
    %100 = vmatprep.subr.mxu0 0.0
    %101 = vmatpush1.msra.mxu0 0.0
    %102 = vmatprep.subr.mxu0 0.0
    %103 = vmatpush1.msra.mxu0 0.0
    %104 = vmatprep.subr.mxu0 0.0
    %105 = vmatpush1.msra.mxu0 0.0
    %106 = vmatprep.subr.mxu0 0.0
    %107 = vmatpush1.msra.mxu0 0.0
    %108 = vmatprep.subr.mxu0 0.0
    %109 = vmatpush1.msra.mxu0 0.0
    %110 = vmatprep.subr.mxu0 0.0
    %111 = vmatpush1.msra.mxu0 0.0
    %112 = vmatprep.subr.mxu0 0.0
    %113 = vmatpush1.msra.mxu0 0.0
    %114 = vmatprep.subr.mxu0 0.0
    %115 = vmatpush1.msra.mxu0 0.0
    %116 = vmatprep.subr.mxu0 0.0
    %117 = vmatpush1.msra.mxu0 0.0
    %118 = vmatprep.subr.mxu0 0.0
    %119 = vmatpush1.msra.mxu0 0.0
    %120 = vmatprep.mubr.f32.mxu0 0.0
    %121 = vmatmul.mubr.f32.gmra.mrb[0].mxu0 %v54
    %v122 = vpop.f32.mrb[0].mxu0
    %v123 = vadd.f32 0.0, %v122
    %v124 = vpop.f32.mrb[0].mxu0
    %125 = vdwg.mxu0
    %v126 = vadd.f32 %v46, %v123
    %127 = vst [vmem:[#allocation2] sm:$0xff] %v126
    // Predicated region
    $region26: #{tpu_custom_call.1} parent=1 // pred_check
      %p128 = pneg %p41
    $region27: #{tpu_custom_call.1} parent=1 // pred_check_branch
      %130 = sbr.rel (%p128) target = $region29
    $region28: #{tpu_custom_call.1} parent=1 // pred_region
      %v131 = vld [vmem:[#allocation2] sm:$0xff]
      %v132 = vld [vmem:[%s2] sm:$0x1]
      %v134 = vlaneseq
      %v135 = vshrl.u32 %v134, 7
      %v136 = vsub.s32 0, %v135
      %v137 = vrot.slane %v132, %v136
      %v139 = vadd.f32 %v131, %v137
      %v140 = vmul.f32 %v139, 0.2
      %v141 = vmax.f32 %v139, %v140
      %142 = vst [vmem:[#allocation8] sm:$0xff] %v141
    $region29: #{tpu_custom_call.1} parent=1 // pred_fallthru
      _
    // Predicated region
    $region30: #{tpu_custom_call.1} parent=1 // pred_check
      _
    $region31: #{tpu_custom_call.1} parent=1 // pred_check_branch
      %144 = sbr.rel (0) target = $region33
    $region32: #{tpu_custom_call.1} parent=1 // pred_region
      %s146 = ssub.s32 128, 128
      %147 = vsyncadd [#allocation5], %s146
      %s149 = sshll.u32 [#allocation8], 4
      %s150 = int_to_ptr.vmem [resolvable:$true] %s149
      %152 = dma.vmem_to_hbm [thread:$0]  %s150, 128, %s3, [#allocation5]
    $region33: #{tpu_custom_call.1} parent=1 // pred_fallthru
      _
    // Predicated region
    $region34: #{tpu_custom_call.1} parent=1 // pred_check
      _
    $region35: #{tpu_custom_call.1} parent=1 // pred_check_branch
      %154 = sbr.rel (0) target = $region37
    $region36: #{tpu_custom_call.1} parent=1 // pred_region
      %155 = dma.done [#allocation5], 128
    $region37: #{tpu_custom_call.1} parent=1 // pred_fallthru
      _
    %156 = vsyncpa [#allocation4], 1
    %157 = vsyncpa [#allocation7], 1
    %158 = vsyncpa [#allocation5], 1

// kernel: tpu_custom_call.1
$region0: #{tpu_custom_call.1}
  #allocation0 [shape = 'u32[]', space=smem, size = 0x4, offset = 0x4, fixed_abs, tag = 'smem constant byte address 0x4 - core index']
  #allocation1 [shape = 'u32[144,128]{1,0:T(1,128)}', space=vmem, size = 0x12000, scoped, tag = 'internal scratch']
  #allocation2 [shape = 'f32[8,128]{1,0:T(8,128)}', space=vmem, size = 0x1000, scoped, tag = 'scratch operand']
  %s0 = inlined_call_operand.hbm [shape: f32[8,32], index: 0, kind: input, shape index: {}]
  %s1 = inlined_call_operand.hbm [shape: f32[32,128], index: 1, kind: input, shape index: {}]
  %s2 = inlined_call_operand.vmem [shape: f32[1,128], index: 2, kind: input, shape index: {}]
  %s3 = inlined_call_operand.hbm [shape: f32[8,128], index: 3, kind: output, shape index: {}]
  %s4 = sld [smem:[#allocation0]]
  $region38: #{tpu_custom_call.1} parent=0
    _
  %s6 = ssub.s32 1, %s4
  %s7 = scalar_select 0, %s6, %s4
  $region1: #{tpu_custom_call.1} parent=0
    #allocation3 [shape = 'u8[4096]{0}', space=vmem, size = 0x1000, scoped, tag = 'input window, operand 0, single buffered']
    #allocation4 [shape = 's32[1]{0}', space=sflag, size = 0x4, scoped, tag = 'scoped memory for tpu_custom_call.1']
    #allocation5 [shape = 's32[1]{0}', space=sflag, size = 0x4, scoped, tag = 'scoped memory for tpu_custom_call.1']
    #allocation6 [shape = 'u8[16384]{0}', space=vmem, size = 0x4000, scoped, tag = 'input window, operand 1, single buffered']
    #allocation7 [shape = 's32[1]{0}', space=sflag, size = 0x4, scoped, tag = 'scoped memory for tpu_custom_call.1']
    #allocation8 [shape = 'u8[4096]{0}', space=vmem, size = 0x1000, scoped, tag = 'output window, operand 0, single buffered']
    %8 = vsyncpa [#allocation4], 0
    %9 = vsyncpa [#allocation7], 0
    %10 = vsyncpa [#allocation5], 0
    // Predicated region
    $region2: #{tpu_custom_call.1} parent=1 // pred_check
      _
    $region3: #{tpu_custom_call.1} parent=1 // pred_check_branch
      %12 = sbr.rel (0) target = $region5
    $region4: #{tpu_custom_call.1} parent=1 // pred_region
      %s14 = ssub.s32 128, 128
      %15 = vsyncadd [#allocation4], %s14
      %s17 = sshll.u32 [#allocation3], 4
      %s18 = int_to_ptr.vmem [resolvable:$true] %s17
      %20 = dma.hbm_to_vmem [thread:$0]  %s0, 128, %s18, [#allocation4]
    $region5: #{tpu_custom_call.1} parent=1 // pred_fallthru
      _
    // Predicated region
    $region6: #{tpu_custom_call.1} parent=1 // pred_check
      _
    $region7: #{tpu_custom_call.1} parent=1 // pred_check_branch
      %22 = sbr.rel (0) target = $region9
    $region8: #{tpu_custom_call.1} parent=1 // pred_region
      %s24 = ssub.s32 512, 512
      %25 = vsyncadd [#allocation7], %s24
      %s26 = sshll.u32 [#allocation6], 4
      %s27 = int_to_ptr.vmem [resolvable:$true] %s26
      %32 = dma.hbm_to_vmem [thread:$0]  %s1, 512, %s27, [#allocation7], 128, 128, 8
    $region9: #{tpu_custom_call.1} parent=1 // pred_fallthru
      _
    // Predicated region
    $region10: #{tpu_custom_call.1} parent=1 // pred_check
      _
    $region11: #{tpu_custom_call.1} parent=1 // pred_check_branch
      %34 = sbr.rel (0) target = $region13
    $region12: #{tpu_custom_call.1} parent=1 // pred_region
      _
    $region13: #{tpu_custom_call.1} parent=1 // pred_fallthru
      _
    // Predicated region
    $region14: #{tpu_custom_call.1} parent=1 // pred_check
      _
    $region15: #{tpu_custom_call.1} parent=1 // pred_check_branch
      %36 = sbr.rel (0) target = $region17
    $region16: #{tpu_custom_call.1} parent=1 // pred_region
      %37 = dma.done [#allocation4], 128
    $region17: #{tpu_custom_call.1} parent=1 // pred_fallthru
      _
    // Predicated region
    $region18: #{tpu_custom_call.1} parent=1 // pred_check
      _
    $region19: #{tpu_custom_call.1} parent=1 // pred_check_branch
      %39 = sbr.rel (0) target = $region21
    $region20: #{tpu_custom_call.1} parent=1 // pred_region
      %40 = dma.done [#allocation7], 512
    $region21: #{tpu_custom_call.1} parent=1 // pred_fallthru
      _
    %p41 = scmp.eq.s32.totalorder 0, 0
    // Predicated region
    $region22: #{tpu_custom_call.1} parent=1 // pred_check
      %p42 = pneg %p41
    $region23: #{tpu_custom_call.1} parent=1 // pred_check_branch
      %44 = sbr.rel (%p42) target = $region25
    $region24: #{tpu_custom_call.1} parent=1 // pred_region
      %45 = vst [vmem:[#allocation2] sm:$0xff] 0.0
    $region25: #{tpu_custom_call.1} parent=1 // pred_fallthru
      _
    %v46 = vld [vmem:[#allocation2] sm:$0xff]
    %v47 = vld [vmem:[#allocation3] sm:$0xff]
    %v48 = vld [vmem:[#allocation6] sm:$0xff]
    %v49 = vld [vmem:[#allocation6 + $0x8] sm:$0xff]
    %v50 = vld [vmem:[#allocation6 + $0x10] sm:$0xff]
    %v51 = vld [vmem:[#allocation6 + $0x18] sm:$0xff]
    %vm52 = vcmask 261120
    %v54 = vsel %vm52, %v47, 0
    %56 = vmatprep.subr.mxu0 0.0
    %57 = vmatpush1.msra.mxu0 %v48
    %58 = vmatprep.subr.mxu0 0.0
    %59 = vmatpush1.msra.mxu0 %v49
    %60 = vmatprep.subr.mxu0 0.0
    %61 = vmatpush1.msra.mxu0 %v50
    %62 = vmatprep.subr.mxu0 0.0
    %63 = vmatpush1.msra.mxu0 %v51
    %64 = vmatprep.subr.mxu0 0.0
    %65 = vmatpush1.msra.mxu0 0.0
    %66 = vmatprep.subr.mxu0 0.0
    %67 = vmatpush1.msra.mxu0 0.0
    %68 = vmatprep.subr.mxu0 0.0
    %69 = vmatpush1.msra.mxu0 0.0
    %70 = vmatprep.subr.mxu0 0.0
    %71 = vmatpush1.msra.mxu0 0.0
    %72 = vmatprep.subr.mxu0 0.0
    %73 = vmatpush1.msra.mxu0 0.0
    %74 = vmatprep.subr.mxu0 0.0
    %75 = vmatpush1.msra.mxu0 0.0
    %76 = vmatprep.subr.mxu0 0.0
    %77 = vmatpush1.msra.mxu0 0.0
    %78 = vmatprep.subr.mxu0 0.0
    %79 = vmatpush1.msra.mxu0 0.0
    %80 = vmatprep.subr.mxu0 0.0
    %81 = vmatpush1.msra.mxu0 0.0
    %82 = vmatprep.subr.mxu0 0.0
    %83 = vmatpush1.msra.mxu0 0.0
    %84 = vmatprep.subr.mxu0 0.0
    %85 = vmatpush1.msra.mxu0 0.0
    %86 = vmatprep.subr.mxu0 0.0
    %87 = vmatpush1.msra.mxu0 0.0
    %88 = vmatprep.subr.mxu0 0.0
    %89 = vmatpush1.msra.mxu0 0.0
    %90 = vmatprep.subr.mxu0 0.0
    %91 = vmatpush1.msra.mxu0 0.0
    %92 = vmatprep.subr.mxu0 0.0
    %93 = vmatpush1.msra.mxu0 0.0
    %94 = vmatprep.subr.mxu0 0.0
    %95 = vmatpush1.msra.mxu0 0.0
    %96 = vmatprep.subr.mxu0 0.0
    %97 = vmatpush1.msra.mxu0 0.0
    %98 = vmatprep.subr.mxu0 0.0
    %99 = vmatpush1.msra.mxu0 0.0
    %100 = vmatprep.subr.mxu0 0.0
    %101 = vmatpush1.msra.mxu0 0.0
    %102 = vmatprep.subr.mxu0 0.0
    %103 = vmatpush1.msra.mxu0 0.0
    %104 = vmatprep.subr.mxu0 0.0
    %105 = vmatpush1.msra.mxu0 0.0
    %106 = vmatprep.subr.mxu0 0.0
    %107 = vmatpush1.msra.mxu0 0.0
    %108 = vmatprep.subr.mxu0 0.0
    %109 = vmatpush1.msra.mxu0 0.0
    %110 = vmatprep.subr.mxu0 0.0
    %111 = vmatpush1.msra.mxu0 0.0
    %112 = vmatprep.subr.mxu0 0.0
    %113 = vmatpush1.msra.mxu0 0.0
    %114 = vmatprep.subr.mxu0 0.0
    %115 = vmatpush1.msra.mxu0 0.0
    %116 = vmatprep.subr.mxu0 0.0
    %117 = vmatpush1.msra.mxu0 0.0
    %118 = vmatprep.subr.mxu0 0.0
    %119 = vmatpush1.msra.mxu0 0.0
    %120 = vmatprep.mubr.f32.mxu0 0.0
    %121 = vmatmul.mubr.f32.gmra.mrb[0].mxu0 %v54
    %v122 = vpop.f32.mrb[0].mxu0
    %v123 = vadd.f32 0.0, %v122
    %v124 = vpop.f32.mrb[0].mxu0
    %125 = vdwg.mxu0
    %v126 = vadd.f32 %v46, %v123
    %127 = vst [vmem:[#allocation2] sm:$0xff] %v126
    // Predicated region
    $region26: #{tpu_custom_call.1} parent=1 // pred_check
      %p128 = pneg %p41
    $region27: #{tpu_custom_call.1} parent=1 // pred_check_branch
      %130 = sbr.rel (%p128) target = $region29
    $region28: #{tpu_custom_call.1} parent=1 // pred_region
      %v131 = vld [vmem:[#allocation2] sm:$0xff]
      %v132 = vld [vmem:[%s2] sm:$0x1]
      %v134 = vlaneseq
      %v135 = vshrl.u32 %v134, 7
      %v136 = vsub.s32 0, %v135
      %v137 = vrot.slane %v132, %v136
      %v139 = vadd.f32 %v131, %v137
      %v140 = vmul.f32 %v139, 0.2
      %v141 = vmax.f32 %v139, %v140
      %142 = vst [vmem:[#allocation8] sm:$0xff] %v141
    $region29: #{tpu_custom_call.1} parent=1 // pred_fallthru
      _
    // Predicated region
    $region30: #{tpu_custom_call.1} parent=1 // pred_check
      _
    $region31: #{tpu_custom_call.1} parent=1 // pred_check_branch
      %144 = sbr.rel (0) target = $region33
    $region32: #{tpu_custom_call.1} parent=1 // pred_region
      %s146 = ssub.s32 128, 128
      %147 = vsyncadd [#allocation5], %s146
      %s149 = sshll.u32 [#allocation8], 4
      %s150 = int_to_ptr.vmem [resolvable:$true] %s149
      %152 = dma.vmem_to_hbm [thread:$0]  %s150, 128, %s3, [#allocation5]
    $region33: #{tpu_custom_call.1} parent=1 // pred_fallthru
      _
    // Predicated region
    $region34: #{tpu_custom_call.1} parent=1 // pred_check
      _
    $region35: #{tpu_custom_call.1} parent=1 // pred_check_branch
      %154 = sbr.rel (0) target = $region37
    $region36: #{tpu_custom_call.1} parent=1 // pred_region
      %155 = dma.done [#allocation5], 128
    $region37: #{tpu_custom_call.1} parent=1 // pred_fallthru
      _
    %156 = vsyncpa [#allocation4], 1
    %157 = vsyncpa [#allocation7], 1
    %158 = vsyncpa [#allocation5], 1

</llo_original>
